<compile_context>
chip_gen: v5e
topology: v5e:2x2
jax: 0.10.0
libtpu: 0.0.40
codegen_flags: <defaults>
</compile_context>

<pallas_src>
import jax
import jax.numpy as jnp
from jax.experimental import pallas as pl
from jax.experimental.pallas import tpu as pltpu


def _fsha_kernel(q_ref, node_ref, neigh_ref, mask_ref, wqk_ref, wv_ref,
                 out_ref, attn_ref):
    bt, t_pad, hid = node_ref.shape
    n_nbr = neigh_ref.shape[1]
    n_src = n_nbr + 1

    node = node_ref[...]                                      # (Bt, Tp, H)    compute dtype
    neigh = neigh_ref[...].reshape(bt, n_nbr * t_pad, hid)    # (Bt, N*Tp, H)  free: Tp sublane-aligned
    mask = mask_ref[...]                                      # (Bt, Tp) int32, 1 == masked
    w_qk = wqk_ref[...]                                       # (H, H) = Wq @ Wk^T / temperature
    w_v = wv_ref[...]                                         # (H, H)

    # Query row (gathered in the wrapper) through the folded score weight:
    # scores need q Wq (k Wk)^T == (q (Wq Wk^T)) . k, so Wk is never applied to the keys.
    qk = jnp.dot(q_ref[...], w_qk, preferred_element_type=jnp.float32)   # (Bt, H) f32
    qk_c = qk.astype(node.dtype)[:, None, :]                             # (Bt, 1, H)

    # Scores, lane-dense (Bt, L).  Batch (Bt) is the large dim and H is small, so the VPU
    # multiply + XLU lane-reduce beats block_b tiny per-batch MXU matvecs here.
    # (MXU alternative per review: jnp.einsum('bqh,bkh->bqk', ...) with a size-1 q block;
    #  kept on the VPU on purpose since the MXU version serializes over the batch dim.)
    s_node = jnp.sum(node * qk_c, axis=-1, dtype=jnp.float32)            # (Bt, Tp)
    s_ngh = jnp.sum(neigh * qk_c, axis=-1, dtype=jnp.float32)            # (Bt, N*Tp)
    s = jnp.concatenate([s_node, s_ngh], axis=-1)                        # (Bt, L)

    # (B, T) mask repeated over the N+1 sources; softmax over all L keys.
    mask_l = jnp.concatenate([mask] * n_src, axis=-1)                    # (Bt, L)
    s = jnp.where(mask_l > 0, -jnp.inf, s)
    m = jnp.maximum(jnp.max(s, axis=-1, keepdims=True), -1e30)           # fully-masked guard
    e = jnp.exp(s - m)
    denom = jnp.maximum(jnp.sum(e, axis=-1, keepdims=True), 1e-30)
    a = e * (1.0 / denom)                                                # (Bt, L) f32
    attn_ref[...] = a.astype(attn_ref.dtype)                             # lane-dense store

    # Value projections (MXU), node and neigh separately -> no (Bt, L, H) concat copy.
    v_node = jnp.dot(node.reshape(bt * t_pad, hid), w_v,
                     preferred_element_type=jnp.float32).reshape(bt, t_pad, hid)
    v_ngh = jnp.dot(neigh.reshape(bt * n_nbr * t_pad, hid), w_v,
                    preferred_element_type=jnp.float32).reshape(bt, n_nbr * t_pad, hid)

    out = (jnp.sum(v_node * a[:, :t_pad, None], axis=1)
           + jnp.sum(v_ngh * a[:, t_pad:, None], axis=1))                # (Bt, H) f32
    out_ref[...] = out.astype(out_ref.dtype)


def _choose_block_b(batch, per_b_vmem, per_b_input, vmem_budget):
    """Batch tile: biggest divisor that fits VMEM, shrunk toward ~2 MiB of input per grid
    step, while keeping >= 2 grid steps (v7x has 2 TensorCores) when each step still moves
    a useful amount of data.  Constrained to multiples of 8 (or == batch) so the 2-D
    mask/output blocks satisfy the (8, 128) sublane rule."""
    cands = [d for d in range(1, batch + 1)
             if batch % d == 0 and (d % 8 == 0 or d == batch)]
    fitting = [d for d in cands if d * per_b_vmem <= vmem_budget] or cands[:1]
    block_b = fitting[-1]
    for d in fitting:                                  # smallest tile with >= ~2 MiB of input
        if d * per_b_input >= (2 << 20):
            block_b = d
            break
    if batch // block_b < 2:                           # expose the second v7x TensorCore
        alt = [d for d in fitting
               if batch // d >= 2 and d * per_b_input >= (512 << 10)]
        if alt:
            block_b = alt[-1]
    return block_b


def feature_single_head_attention(node_output, neigh_output, current_time_step,
                                  proj_query, proj_key, proj_value,
                                  attn_mask=None, *, temperature=1.0,
                                  neighbors_number=None, block_b=None,
                                  compute_dtype=None):
    """Pallas implementation of FeatureSingleHeadAttention.forward.

    node_output: (B, T, H); neigh_output: (B, N, T, H);
    attn_mask:   (B, T) bool (True == mask out; applied to every source) or None.
    Returns (output (B, H) f32, attention (B, N+1, T) f32).

    Documented divergences from the torch module: always returns (B, H) (torch's .squeeze()
    gives (H,) when B == 1); fully-masked rows produce zeros instead of NaN; temperature
    must be nonzero (it is folded into the query/key weight).
    `neighbors_number` is accepted for API parity but unused (as in the torch forward).
    """
    del neighbors_number
    B, T, H = node_output.shape
    N = neigh_output.shape[1]
    n_src = N + 1

    cdt = jnp.dtype(compute_dtype) if compute_dtype is not None else jnp.dtype(node_output.dtype)
    ds = cdt.itemsize

    # Pad T to a sublane multiple (8 for f32, 16 for bf16) so leading-axis merges are free.
    t_align = max(8, 32 // ds)
    T_pad = -(-T // t_align) * t_align
    Lp = n_src * T_pad

    node_c = node_output.astype(cdt)
    neigh_c = neigh_output.astype(cdt)
    if T_pad != T:
        node_c = jnp.pad(node_c, ((0, 0), (0, T_pad - T), (0, 0)))
        neigh_c = jnp.pad(neigh_c, ((0, 0), (0, 0), (0, T_pad - T), (0, 0)))

    if attn_mask is None:
        mask_i32 = jnp.zeros((B, T), dtype=jnp.int32)
    else:
        mask_i32 = attn_mask.astype(jnp.int32)
    if T_pad != T:
        mask_i32 = jnp.pad(mask_i32, ((0, 0), (0, T_pad - T)), constant_values=1)

    # Current-time-step query row: tiny (B, H) XLA gather (layout plumbing) replacing the
    # in-kernel one-hot select; handles a traced current_time_step without recompiles.
    ct = jnp.asarray(current_time_step, dtype=jnp.int32)
    q_cur = jax.lax.dynamic_slice_in_dim(node_c, ct, 1, axis=1).reshape(B, H)

    # Fold the whole score path q Wq (k Wk)^T / temperature into one (H, H) weight.
    w_qk = ((jnp.asarray(proj_query, jnp.float32)
             @ jnp.asarray(proj_key, jnp.float32).T) / float(temperature)).astype(cdt)
    w_v = jnp.asarray(proj_value).astype(cdt)

    # ---- batch-tile sizing from a VMEM budget (conservative across v5e/v6e/v7x) --------
    in_per_b = (T_pad * H + N * T_pad * H + H) * ds + T_pad * 4
    inter_per_b = Lp * H * (8 + ds) + 12 * Lp * 4 + 4 * H * 4
    out_per_b = (H + Lp) * 4
    per_b_vmem = 2 * in_per_b + inter_per_b + 2 * out_per_b

    big_weights = 4 * H * H * ds >= (8 << 20)          # 2 weights x 2 pipeline buffers
    weight_vmem = 2 * H * H * ds * (1 if big_weights else 2)

    if block_b is None:
        block_b = _choose_block_b(B, per_b_vmem, in_per_b,
                                  vmem_budget=max((20 << 20) - weight_vmem, 4 << 20))
    assert B % block_b == 0 and (block_b % 8 == 0 or block_b == B), block_b

    vmem_limit = int(min(48 << 20,
                         max(2 * (block_b * per_b_vmem + weight_vmem), 32 << 20)))

    def _w_spec():
        if big_weights:   # keep a single buffer for huge resident weights (v7x VMEM headroom)
            return pl.BlockSpec((H, H), lambda i: (0, 0), pipeline_mode=pl.Buffered(1))
        return pl.BlockSpec((H, H), lambda i: (0, 0))

    grid_spec = pltpu.PrefetchScalarGridSpec(
        num_scalar_prefetch=0,
        grid=(B // block_b,),
        in_specs=[
            pl.BlockSpec((block_b, H), lambda i: (i, 0)),                  # query row
            pl.BlockSpec((block_b, T_pad, H), lambda i: (i, 0, 0)),        # node
            pl.BlockSpec((block_b, N, T_pad, H), lambda i: (i, 0, 0, 0)),  # neigh
            pl.BlockSpec((block_b, T_pad), lambda i: (i, 0)),              # mask (int32)
            _w_spec(),                                                     # Wq Wk^T / temperature
            _w_spec(),                                                     # Wv
        ],
        out_specs=[
            pl.BlockSpec((block_b, H), lambda i: (i, 0)),                  # output (B, H)
            pl.BlockSpec((block_b, Lp), lambda i: (i, 0)),                 # attention, lane-dense
        ],
    )

    cost = pl.CostEstimate(
        flops=2 * B * (H * H + Lp * H * H + 2 * Lp * H),
        transcendentals=B * Lp,
        bytes_accessed=(ds * (B * (n_src * T_pad * H + H) + 2 * H * H)
                        + 4 * (B * T_pad + B * H + B * Lp)),
    )

    out, attn_flat = pl.pallas_call(
        _fsha_kernel,
        out_shape=(jax.ShapeDtypeStruct((B, H), jnp.float32),
                   jax.ShapeDtypeStruct((B, Lp), jnp.float32)),
        grid_spec=grid_spec,
        compiler_params=pltpu.CompilerParams(
            dimension_semantics=("parallel",),
            vmem_limit_bytes=vmem_limit),
        cost_estimate=cost,
    )(q_cur, node_c, neigh_c, mask_i32, w_qk, w_v)

    attn = attn_flat.reshape(B, n_src, T_pad)[:, :, :T]   # free layout plumbing + pad strip
    return out, attn


def _reference(node, neigh, neighbors_number, ct, attn_mask, wq, wk, wv, temp):
    """Pure-JAX reference mirroring the PyTorch forward step by step."""
    del neighbors_number
    B, T, H = node.shape
    N = neigh.shape[1]
    querys = jnp.tile(node, (N + 1, 1, 1))                                   # ((N+1)B, T, H)
    keys = jnp.concatenate([node] + [neigh[:, n] for n in range(N)], axis=0)
    values = jnp.concatenate([node[:, None], neigh], axis=1).reshape(B, -1, H)
    w_q = querys @ wq
    w_k = keys @ wk
    w_v = values @ wv
    S = jnp.einsum('btd,bsd->bts', w_q, w_k)                                 # ((N+1)B, T, T)
    S = jnp.concatenate(jnp.split(S, N + 1, axis=0), axis=-1)                # (B, T, (N+1)T)
    S = S[:, ct]                                                             # (B, (N+1)T)
    if attn_mask is not None:
        S = jnp.where(jnp.tile(attn_mask, (1, N + 1)), -jnp.inf, S)
    S = S / temp
    A = jax.nn.softmax(S, axis=-1)
    out = jnp.einsum('bl,blh->bh', A, w_v)
    attn = jnp.stack(jnp.split(A, N + 1, axis=-1), axis=1)                   # (B, N+1, T)
    return out, attn


if __name__ == "__main__":
    key = jax.random.PRNGKey(0)

    def make_case(k, B, H, T, N):
        k1, k2, k3, k4, k5, k6 = jax.random.split(k, 6)
        node = jax.random.normal(k1, (B, T, H), dtype=jnp.float32)
        neigh = jax.random.normal(k2, (B, N, T, H), dtype=jnp.float32)
        mask = jax.random.uniform(k3, (B, T)) > 0.7
        mask = mask.at[:, 0].set(False)            # keep >=1 unmasked key per row
        wq = 0.1 * jax.random.normal(k4, (H, H), dtype=jnp.float32)
        wk = 0.1 * jax.random.normal(k5, (H, H), dtype=jnp.float32)
        wv = 0.1 * jax.random.normal(k6, (H, H), dtype=jnp.float32)
        return node, neigh, mask, wq, wk, wv

    cases = [
        #  B   H   T   N  ct  temp  compute_dtype    tol
        (  2, 32,  8,  3,  3, 1.0,  jnp.float32,    1e-4),
        (  4, 32, 10,  2,  7, 2.0,  jnp.float32,    1e-4),   # T not sublane-aligned -> padding path
        (  2, 32,  8,  3,  5, 1.0,  jnp.bfloat16,   5e-2),   # bf16 inputs (halved HBM traffic)
    ]
    keys = jax.random.split(key, len(cases))
    for (B, H, T, N, ct, temp, cdt, tol), k in zip(cases, keys):
        node, neigh, mask, wq, wk, wv = make_case(k, B, H, T, N)
        out, attn = feature_single_head_attention(
            node, neigh, ct, wq, wk, wv, attn_mask=mask,
            temperature=temp, neighbors_number=N, compute_dtype=cdt)
        jax.block_until_ready((out, attn))

        ref_out, ref_attn = _reference(node, neigh, N, ct, mask, wq, wk, wv, temp)
        assert out.shape == (B, H) and attn.shape == (B, N + 1, T)
        assert jnp.allclose(out, ref_out, atol=tol, rtol=tol), (
            str(cdt), float(jnp.max(jnp.abs(out - ref_out))))
        assert jnp.allclose(attn, ref_attn, atol=tol, rtol=tol), (
            str(cdt), float(jnp.max(jnp.abs(attn - ref_attn))))

    print("KERNEL_OK")
</pallas_src>

<mosaic_0001>
module attributes {stable_mosaic.version = 11 : i64} {
  func.func @_fsha_kernel(%arg0: i32, %arg1: memref<2x32xf32, #tpu.memory_space<vmem>>, %arg2: memref<2x8x32xf32, #tpu.memory_space<vmem>>, %arg3: memref<2x3x8x32xf32, #tpu.memory_space<vmem>>, %arg4: memref<2x8xi32, #tpu.memory_space<vmem>>, %arg5: memref<32x32xf32, #tpu.memory_space<vmem>>, %arg6: memref<32x32xf32, #tpu.memory_space<vmem>>, %arg7: memref<2x32xf32, #tpu.memory_space<vmem>>, %arg8: memref<2x32xf32, #tpu.memory_space<vmem>>) attributes {dimension_semantics = [#tpu.dimension_semantics<parallel>], iteration_bounds = array<i64: 1>, scalar_prefetch = 0 : i64, scratch_operands = 0 : i64, tpu.core_type = #tpu.core_type<tc>, window_params = [{transform_indices = @transform_0, window_bounds = array<i64: 2, 32>}, {transform_indices = @transform_1, window_bounds = array<i64: 2, 8, 32>}, {transform_indices = @transform_2, window_bounds = array<i64: 2, 3, 8, 32>}, {transform_indices = @transform_3, window_bounds = array<i64: 2, 8>}, {pipeline_mode = #tpu.pipeline_mode<synchronous>, transform_indices = @transform_4, window_bounds = array<i64: 32, 32>}, {pipeline_mode = #tpu.pipeline_mode<synchronous>, transform_indices = @transform_5, window_bounds = array<i64: 32, 32>}, {transform_indices = @transform_6, window_bounds = array<i64: 2, 32>}, {transform_indices = @transform_7, window_bounds = array<i64: 2, 32>}]} {
    %c0 = arith.constant 0 : index
    %c0_0 = arith.constant 0 : index
    %c0_1 = arith.constant 0 : index
    %0 = vector.load %arg2[%c0, %c0_0, %c0_1] : memref<2x8x32xf32, #tpu.memory_space<vmem>>, vector<2x8x32xf32>
    %c0_2 = arith.constant 0 : index
    %c0_3 = arith.constant 0 : index
    %c0_4 = arith.constant 0 : index
    %c0_5 = arith.constant 0 : index
    %1 = vector.load %arg3[%c0_2, %c0_3, %c0_4, %c0_5] : memref<2x3x8x32xf32, #tpu.memory_space<vmem>>, vector<2x3x8x32xf32>
    %2 = vector.shape_cast %1 : vector<2x3x8x32xf32> to vector<2x24x32xf32>
    %c0_6 = arith.constant 0 : index
    %c0_7 = arith.constant 0 : index
    %3 = vector.load %arg4[%c0_6, %c0_7] : memref<2x8xi32, #tpu.memory_space<vmem>>, vector<2x8xi32>
    %c0_8 = arith.constant 0 : index
    %c0_9 = arith.constant 0 : index
    %4 = vector.load %arg5[%c0_8, %c0_9] : memref<32x32xf32, #tpu.memory_space<vmem>>, vector<32x32xf32>
    %c0_10 = arith.constant 0 : index
    %c0_11 = arith.constant 0 : index
    %5 = vector.load %arg6[%c0_10, %c0_11] : memref<32x32xf32, #tpu.memory_space<vmem>>, vector<32x32xf32>
    %c0_12 = arith.constant 0 : index
    %c0_13 = arith.constant 0 : index
    %6 = vector.load %arg1[%c0_12, %c0_13] : memref<2x32xf32, #tpu.memory_space<vmem>>, vector<2x32xf32>
    %cst = arith.constant dense<0.000000e+00> : vector<2x32xf32>
    %7 = tpu.matmul %6, %4, %cst {dimension_numbers = #tpu.dot_dimension_numbers<[1], [0], [0], [1], [0, 0, 1, 1], [], []>} : vector<2x32xf32>, vector<32x32xf32>, vector<2x32xf32> -> vector<2x32xf32>
    %8 = vector.shape_cast %7 : vector<2x32xf32> to vector<2x1x32xf32>
    %9 = vector.broadcast %8 : vector<2x1x32xf32> to vector<2x8x32xf32>
    %10 = arith.mulf %0, %9 : vector<2x8x32xf32>
    %cst_14 = arith.constant dense<0.000000e+00> : vector<2x8xf32>
    %11 = vector.multi_reduction <add>, %10, %cst_14 [2] : vector<2x8x32xf32> to vector<2x8xf32>
    %12 = vector.broadcast %8 : vector<2x1x32xf32> to vector<2x24x32xf32>
    %13 = arith.mulf %2, %12 : vector<2x24x32xf32>
    %cst_15 = arith.constant dense<0.000000e+00> : vector<2x24xf32>
    %14 = vector.multi_reduction <add>, %13, %cst_15 [2] : vector<2x24x32xf32> to vector<2x24xf32>
    %15 = tpu.concatenate %11, %14 in 1 : vector<2x8xf32>, vector<2x24xf32> -> vector<2x32xf32>
    %16 = tpu.concatenate %3, %3, %3, %3 in 1 : vector<2x8xi32>, vector<2x8xi32>, vector<2x8xi32>, vector<2x8xi32> -> vector<2x32xi32>
    %c0_i32 = arith.constant 0 : i32
    %17 = vector.broadcast %c0_i32 : i32 to vector<2x32xi32>
    %18 = arith.cmpi sgt, %16, %17 : vector<2x32xi32>
    %cst_16 = arith.constant 0xFF800000 : f32
    %19 = vector.broadcast %cst_16 : f32 to vector<2x32xf32>
    %20 = arith.select %18, %19, %15 : vector<2x32xi1>, vector<2x32xf32>
    %cst_17 = arith.constant dense<0xFF800000> : vector<2xf32>
    %21 = vector.multi_reduction <maximumf>, %20, %cst_17 [1] : vector<2x32xf32> to vector<2xf32>
    %22 = vector.shape_cast %21 : vector<2xf32> to vector<2x1xf32>
    %cst_18 = arith.constant -1.000000e+30 : f32
    %23 = vector.broadcast %cst_18 : f32 to vector<2x1xf32>
    %24 = arith.maximumf %22, %23 : vector<2x1xf32>
    %25 = vector.broadcast %24 : vector<2x1xf32> to vector<2x32xf32>
    %26 = arith.subf %20, %25 : vector<2x32xf32>
    %27 = math.exp %26 : vector<2x32xf32>
    %cst_19 = arith.constant dense<0.000000e+00> : vector<2xf32>
    %28 = vector.multi_reduction <add>, %27, %cst_19 [1] : vector<2x32xf32> to vector<2xf32>
    %29 = vector.shape_cast %28 : vector<2xf32> to vector<2x1xf32>
    %cst_20 = arith.constant 1.000000e-30 : f32
    %30 = vector.broadcast %cst_20 : f32 to vector<2x1xf32>
    %31 = arith.maximumf %29, %30 : vector<2x1xf32>
    %cst_21 = arith.constant 1.000000e+00 : f32
    %32 = vector.broadcast %cst_21 : f32 to vector<2x1xf32>
    %33 = arith.divf %32, %31 : vector<2x1xf32>
    %34 = vector.broadcast %33 : vector<2x1xf32> to vector<2x32xf32>
    %35 = arith.mulf %27, %34 : vector<2x32xf32>
    %c0_22 = arith.constant 0 : index
    %c0_23 = arith.constant 0 : index
    %36 = vector.load %arg8[%c0_22, %c0_23] : memref<2x32xf32, #tpu.memory_space<vmem>>, vector<2x32xf32>
    tpu.vector_store %arg8[%c0_22, %c0_23], %35 {strides = array<i32>} : memref<2x32xf32, #tpu.memory_space<vmem>>, vector<2x32xf32>,
    %37 = vector.shape_cast %0 : vector<2x8x32xf32> to vector<16x32xf32>
    %cst_24 = arith.constant dense<0.000000e+00> : vector<16x32xf32>
    %38 = tpu.matmul %37, %5, %cst_24 {dimension_numbers = #tpu.dot_dimension_numbers<[1], [0], [0], [1], [0, 0, 1, 1], [], []>} : vector<16x32xf32>, vector<32x32xf32>, vector<16x32xf32> -> vector<16x32xf32>
    %39 = vector.shape_cast %38 : vector<16x32xf32> to vector<2x8x32xf32>
    %40 = vector.shape_cast %2 : vector<2x24x32xf32> to vector<48x32xf32>
    %cst_25 = arith.constant dense<0.000000e+00> : vector<48x32xf32>
    %41 = tpu.matmul %40, %5, %cst_25 {dimension_numbers = #tpu.dot_dimension_numbers<[1], [0], [0], [1], [0, 0, 1, 1], [], []>} : vector<48x32xf32>, vector<32x32xf32>, vector<48x32xf32> -> vector<48x32xf32>
    %42 = vector.shape_cast %41 : vector<48x32xf32> to vector<2x24x32xf32>
    %43 = vector.extract_strided_slice %35 {offsets = [0, 0], sizes = [2, 8], strides = [1, 1]} : vector<2x32xf32> to vector<2x8xf32>
    %44 = vector.shape_cast %43 : vector<2x8xf32> to vector<2x8x1xf32>
    %45 = vector.broadcast %44 : vector<2x8x1xf32> to vector<2x8x32xf32>
    %46 = arith.mulf %39, %45 : vector<2x8x32xf32>
    %cst_26 = arith.constant dense<0.000000e+00> : vector<2x32xf32>
    %47 = vector.multi_reduction <add>, %46, %cst_26 [1] : vector<2x8x32xf32> to vector<2x32xf32>
    %48 = vector.extract_strided_slice %35 {offsets = [0, 8], sizes = [2, 24], strides = [1, 1]} : vector<2x32xf32> to vector<2x24xf32>
    %49 = vector.shape_cast %48 : vector<2x24xf32> to vector<2x24x1xf32>
    %50 = vector.broadcast %49 : vector<2x24x1xf32> to vector<2x24x32xf32>
    %51 = arith.mulf %42, %50 : vector<2x24x32xf32>
    %cst_27 = arith.constant dense<0.000000e+00> : vector<2x32xf32>
    %52 = vector.multi_reduction <add>, %51, %cst_27 [1] : vector<2x24x32xf32> to vector<2x32xf32>
    %53 = arith.addf %47, %52 : vector<2x32xf32>
    %c0_28 = arith.constant 0 : index
    %c0_29 = arith.constant 0 : index
    %54 = vector.load %arg7[%c0_28, %c0_29] : memref<2x32xf32, #tpu.memory_space<vmem>>, vector<2x32xf32>
    tpu.vector_store %arg7[%c0_28, %c0_29], %53 {strides = array<i32>} : memref<2x32xf32, #tpu.memory_space<vmem>>, vector<2x32xf32>,
    return
  }
  func.func @transform_0(%arg0: i32) -> (i32, i32) {
    %c0_i32 = arith.constant 0 : i32
    %c0_i32_0 = arith.constant 0 : i32
    return %arg0, %c0_i32 : i32, i32
  }
  func.func @transform_1(%arg0: i32) -> (i32, i32, i32) {
    %c0_i32 = arith.constant 0 : i32
    %c0_i32_0 = arith.constant 0 : i32
    %c0_i32_1 = arith.constant 0 : i32
    return %arg0, %c0_i32, %c0_i32_0 : i32, i32, i32
  }
  func.func @transform_2(%arg0: i32) -> (i32, i32, i32, i32) {
    %c0_i32 = arith.constant 0 : i32
    %c0_i32_0 = arith.constant 0 : i32
    %c0_i32_1 = arith.constant 0 : i32
    %c0_i32_2 = arith.constant 0 : i32
    return %arg0, %c0_i32, %c0_i32_0, %c0_i32_1 : i32, i32, i32, i32
  }
  func.func @transform_3(%arg0: i32) -> (i32, i32) {
    %c0_i32 = arith.constant 0 : i32
    %c0_i32_0 = arith.constant 0 : i32
    return %arg0, %c0_i32 : i32, i32
  }
  func.func @transform_4(%arg0: i32) -> (i32, i32) {
    %c0_i32 = arith.constant 0 : i32
    %c0_i32_0 = arith.constant 0 : i32
    %c0_i32_1 = arith.constant 0 : i32
    return %c0_i32, %c0_i32_0 : i32, i32
  }
  func.func @transform_5(%arg0: i32) -> (i32, i32) {
    %c0_i32 = arith.constant 0 : i32
    %c0_i32_0 = arith.constant 0 : i32
    %c0_i32_1 = arith.constant 0 : i32
    return %c0_i32, %c0_i32_0 : i32, i32
  }
  func.func @transform_6(%arg0: i32) -> (i32, i32) {
    %c0_i32 = arith.constant 0 : i32
    %c0_i32_0 = arith.constant 0 : i32
    return %arg0, %c0_i32 : i32, i32
  }
  func.func @transform_7(%arg0: i32) -> (i32, i32) {
    %c0_i32 = arith.constant 0 : i32
    %c0_i32_0 = arith.constant 0 : i32
    return %arg0, %c0_i32 : i32, i32
  }
}

</mosaic_0001>

<llo_original>
// kernel: tpu_custom_call.1
$region0: #{tpu_custom_call.1}
  #allocation0 [shape = 'u32[]', space=smem, size = 0x4, offset = 0x4, fixed_abs, tag = 'smem constant byte address 0x4 - core index']
  #allocation1 [shape = 'u32[72,128]{1,0:T(1,128)}', space=vmem, size = 0x9000, scoped, tag = 'internal scratch']
  %s0 = inlined_call_operand.hbm [shape: f32[2,32], index: 0, kind: input, shape index: {}]
  %s1 = inlined_call_operand.hbm [shape: f32[2,8,32], index: 1, kind: input, shape index: {}]
  %s2 = inlined_call_operand.hbm [shape: f32[2,3,8,32], index: 2, kind: input, shape index: {}]
  %s3 = inlined_call_operand.vmem [shape: s32[2,8], index: 3, kind: input, shape index: {}]
  %s4 = inlined_call_operand.hbm [shape: f32[32,32], index: 4, kind: input, shape index: {}]
  %s5 = inlined_call_operand.hbm [shape: f32[32,32], index: 5, kind: input, shape index: {}]
  %s6 = inlined_call_operand.hbm [shape: f32[2,32], index: 6, kind: output, shape index: {0}]
  %s7 = inlined_call_operand.hbm [shape: f32[2,32], index: 7, kind: output, shape index: {1}]
  %8 = xla_tuple %s6, %s7
  %s9 = sld [smem:[#allocation0]]
  $region62: #{tpu_custom_call.1} parent=0
    _
  %s11 = ssub.s32 1, %s9
  %s12 = scalar_select 0, %s11, %s9
  $region1: #{tpu_custom_call.1} parent=0
    #allocation2 [shape = 'u8[1024]{0}', space=vmem, size = 0x400, scoped, tag = 'input window, operand 0, single buffered']
    #allocation3 [shape = 's32[1]{0}', space=sflag, size = 0x4, scoped, tag = 'scoped memory for tpu_custom_call.1']
    #allocation4 [shape = 's32[1]{0}', space=sflag, size = 0x4, scoped, tag = 'scoped memory for tpu_custom_call.1']
    #allocation5 [shape = 'u8[8192]{0}', space=vmem, size = 0x2000, scoped, tag = 'input window, operand 1, single buffered']
    #allocation6 [shape = 's32[1]{0}', space=sflag, size = 0x4, scoped, tag = 'scoped memory for tpu_custom_call.1']
    #allocation7 [shape = 'u8[24576]{0}', space=vmem, size = 0x6000, scoped, tag = 'input window, operand 2, single buffered']
    #allocation8 [shape = 'u8[16384]{0}', space=vmem, size = 0x4000, scoped, tag = 'input window, operand 4, single buffered']
    #allocation9 [shape = 's32[1]{0}', space=sflag, size = 0x4, scoped, tag = 'scoped memory for tpu_custom_call.1']
    #allocation10 [shape = 'u8[16384]{0}', space=vmem, size = 0x4000, scoped, tag = 'input window, operand 5, single buffered']
    #allocation11 [shape = 'u8[1024]{0}', space=vmem, size = 0x400, scoped, tag = 'output window, operand 0, single buffered']
    #allocation12 [shape = 'u8[1024]{0}', space=vmem, size = 0x400, scoped, tag = 'output window, operand 1, single buffered']
    #allocation13 [shape = 's32[1]{0}', space=sflag, size = 0x4, scoped, tag = 'scoped memory for tpu_custom_call.1']
    %13 = vsyncpa [#allocation3], 0
    %14 = vsyncpa [#allocation6], 0
    %15 = vsyncpa [#allocation9], 0
    %16 = vsyncpa [#allocation4], 0
    %17 = vsyncpa [#allocation13], 0
    // Predicated region
    $region2: #{tpu_custom_call.1} parent=1 // pred_check
      _
    $region3: #{tpu_custom_call.1} parent=1 // pred_check_branch
      %19 = sbr.rel (0) target = $region5
    $region4: #{tpu_custom_call.1} parent=1 // pred_region
      %21 = vsyncadd [#allocation3], 0
      %s23 = sshll.u32 %s0, 4
      %s24 = int_to_ptr.hbm [resolvable:$true] %s23
      %s25 = sshll.u32 [#allocation2], 4
      %s26 = int_to_ptr.vmem [resolvable:$true] %s25
      %28 = dma.hbm_to_vmem [thread:$0]  %s24, 32, %s26, [#allocation3]
    $region5: #{tpu_custom_call.1} parent=1 // pred_fallthru
      _
    // Predicated region
    $region6: #{tpu_custom_call.1} parent=1 // pred_check
      _
    $region7: #{tpu_custom_call.1} parent=1 // pred_check_branch
      %30 = sbr.rel (0) target = $region9
    $region8: #{tpu_custom_call.1} parent=1 // pred_region
      %32 = vsyncadd [#allocation6], 0
      %s33 = sshll.u32 %s1, 4
      %s34 = int_to_ptr.hbm [resolvable:$true] %s33
      %s35 = sshll.u32 [#allocation5], 4
      %s36 = int_to_ptr.vmem [resolvable:$true] %s35
      %41 = dma.hbm_to_vmem [thread:$0]  %s34, 256, %s36, [#allocation6], 128, 128, 8
    $region9: #{tpu_custom_call.1} parent=1 // pred_fallthru
      _
    // Predicated region
    $region10: #{tpu_custom_call.1} parent=1 // pred_check
      _
    $region11: #{tpu_custom_call.1} parent=1 // pred_check_branch
      %43 = sbr.rel (0) target = $region13
    $region12: #{tpu_custom_call.1} parent=1 // pred_region
      %45 = vsyncadd [#allocation6], 0
      %s46 = sshll.u32 %s2, 4
      %s47 = int_to_ptr.hbm [resolvable:$true] %s46
      %s48 = sshll.u32 [#allocation7], 4
      %s49 = int_to_ptr.vmem [resolvable:$true] %s48
      %54 = dma.hbm_to_vmem [thread:$0]  %s47, 768, %s49, [#allocation6], 128, 128, 8
    $region13: #{tpu_custom_call.1} parent=1 // pred_fallthru
      _
    // Predicated region
    $region14: #{tpu_custom_call.1} parent=1 // pred_check
      _
    $region15: #{tpu_custom_call.1} parent=1 // pred_check_branch
      %56 = sbr.rel (0) target = $region17
    $region16: #{tpu_custom_call.1} parent=1 // pred_region
      _
    $region17: #{tpu_custom_call.1} parent=1 // pred_fallthru
      _
    // Predicated region
    $region18: #{tpu_custom_call.1} parent=1 // pred_check
      _
    $region19: #{tpu_custom_call.1} parent=1 // pred_check_branch
      %58 = sbr.rel (0) target = $region21
    $region20: #{tpu_custom_call.1} parent=1 // pred_region
      %60 = vsyncadd [#allocation9], 0
      %s61 = sshll.u32 %s4, 4
      %s62 = int_to_ptr.hbm [resolvable:$true] %s61
      %s63 = sshll.u32 [#allocation8], 4
      %s64 = int_to_ptr.vmem [resolvable:$true] %s63
      %69 = dma.hbm_to_vmem [thread:$0]  %s62, 512, %s64, [#allocation9], 128, 128, 8
    $region21: #{tpu_custom_call.1} parent=1 // pred_fallthru
      _
    // Predicated region
    $region22: #{tpu_custom_call.1} parent=1 // pred_check
      _
    $region23: #{tpu_custom_call.1} parent=1 // pred_check_branch
      %71 = sbr.rel (0) target = $region25
    $region24: #{tpu_custom_call.1} parent=1 // pred_region
      %73 = vsyncadd [#allocation9], 0
      %s74 = sshll.u32 %s5, 4
      %s75 = int_to_ptr.hbm [resolvable:$true] %s74
      %s76 = sshll.u32 [#allocation10], 4
      %s77 = int_to_ptr.vmem [resolvable:$true] %s76
      %82 = dma.hbm_to_vmem [thread:$0]  %s75, 512, %s77, [#allocation9], 128, 128, 8
    $region25: #{tpu_custom_call.1} parent=1 // pred_fallthru
      _
    // Predicated region
    $region26: #{tpu_custom_call.1} parent=1 // pred_check
      _
    $region27: #{tpu_custom_call.1} parent=1 // pred_check_branch
      %84 = sbr.rel (0) target = $region29
    $region28: #{tpu_custom_call.1} parent=1 // pred_region
      %86 = dma.done [#allocation3], 32
    $region29: #{tpu_custom_call.1} parent=1 // pred_fallthru
      _
    // Predicated region
    $region30: #{tpu_custom_call.1} parent=1 // pred_check
      _
    $region31: #{tpu_custom_call.1} parent=1 // pred_check_branch
      %88 = sbr.rel (0) target = $region33
    $region32: #{tpu_custom_call.1} parent=1 // pred_region
      %90 = dma.done [#allocation6], 256
    $region33: #{tpu_custom_call.1} parent=1 // pred_fallthru
      _
    // Predicated region
    $region34: #{tpu_custom_call.1} parent=1 // pred_check
      _
    $region35: #{tpu_custom_call.1} parent=1 // pred_check_branch
      %92 = sbr.rel (0) target = $region37
    $region36: #{tpu_custom_call.1} parent=1 // pred_region
      %94 = dma.done [#allocation6], 768
    $region37: #{tpu_custom_call.1} parent=1 // pred_fallthru
      _
    // Predicated region
    $region38: #{tpu_custom_call.1} parent=1 // pred_check
      _
    $region39: #{tpu_custom_call.1} parent=1 // pred_check_branch
      %96 = sbr.rel (0) target = $region41
    $region40: #{tpu_custom_call.1} parent=1 // pred_region
      %98 = dma.done [#allocation9], 512
    $region41: #{tpu_custom_call.1} parent=1 // pred_fallthru
      _
    // Predicated region
    $region42: #{tpu_custom_call.1} parent=1 // pred_check
      _
    $region43: #{tpu_custom_call.1} parent=1 // pred_check_branch
      %100 = sbr.rel (0) target = $region45
    $region44: #{tpu_custom_call.1} parent=1 // pred_region
      %102 = dma.done [#allocation9], 512
    $region45: #{tpu_custom_call.1} parent=1 // pred_fallthru
      _
    %v103 = vld [vmem:[#allocation5] sm:$0xff]
    %v104 = vld [vmem:[#allocation5 + $0x8] sm:$0xff]
    %v105 = vld [vmem:[#allocation7] sm:$0xff]
    %v106 = vld [vmem:[#allocation7 + $0x8] sm:$0xff]
    %v107 = vld [vmem:[#allocation7 + $0x10] sm:$0xff]
    %v108 = vld [vmem:[#allocation7 + $0x18] sm:$0xff]
    %v109 = vld [vmem:[#allocation7 + $0x20] sm:$0xff]
    %v110 = vld [vmem:[#allocation7 + $0x28] sm:$0xff]
    %v111 = vld [vmem:[%s3] sm:$0x3]
    %v112 = vld [vmem:[#allocation8] sm:$0xff]
    %v113 = vld [vmem:[#allocation8 + $0x8] sm:$0xff]
    %v114 = vld [vmem:[#allocation8 + $0x10] sm:$0xff]
    %v115 = vld [vmem:[#allocation8 + $0x18] sm:$0xff]
    %v116 = vld [vmem:[#allocation10] sm:$0xff]
    %v117 = vld [vmem:[#allocation10 + $0x8] sm:$0xff]
    %v118 = vld [vmem:[#allocation10 + $0x10] sm:$0xff]
    %v119 = vld [vmem:[#allocation10 + $0x18] sm:$0xff]
    %v120 = vld [vmem:[#allocation2] sm:$0x3]
    %vm121 = vcmask 261120
    %v123 = vsel %vm121, %v120, 0
    %125 = vmatpush.msra.mxu0 0.0
    %126 = vmatpush.msra.mxu0 0.0
    %127 = vmatpush.msra.mxu0 0.0
    %128 = vmatpush.msra.mxu0 0.0
    %129 = vmatpush.msra.mxu0 0.0
    %130 = vmatpush.msra.mxu0 0.0
    %131 = vmatpush.msra.mxu0 0.0
    %132 = vmatpush.msra.mxu0 0.0
    %133 = vmatpush.msra.mxu0 0.0
    %134 = vmatpush.msra.mxu0 0.0
    %135 = vmatpush.msra.mxu0 0.0
    %136 = vmatpush.msra.mxu0 0.0
    %137 = vmatpush.msra.mxu0 %v115
    %138 = vmatpush.msra.mxu0 %v114
    %139 = vmatpush.msra.mxu0 %v113
    %140 = vmatpush.msra.mxu0 %v112
    %141 = vmatmul.f32.gmra.mxu0 %v123
    %v142 = vpop.f32.mrf.mxu0
    %v143 = vadd.f32 0.0, %v142
    %144 = vdwg.mxu0
    %v146 = vrot.slane %v143, 1
    %v147 = vperm.slane %v143, 0
    %v148 = vperm.slane %v146, 0
    %v151 = vmul.f32 %v103, %v147
    %v152 = vmul.f32 %v104, %v148
    %v153 = vsel %vm121, %v151, 0.0
    %154 = vadd.xlane.f32.xlu0 %v153
    %v155 = vpop.xlane.xlu0 %154
    %v156 = vsel %vm121, %v152, 0.0
    %157 = vadd.xlane.f32.xlu0 %v156
    %v158 = vpop.xlane.xlu0 %157
    %v159 = vmul.f32 %v105, %v147
    %v160 = vmul.f32 %v106, %v147
    %v161 = vmul.f32 %v107, %v147
    %v162 = vmul.f32 %v108, %v148
    %v163 = vmul.f32 %v109, %v148
    %v164 = vmul.f32 %v110, %v148
    %v165 = vsel %vm121, %v159, 0.0
    %166 = vadd.xlane.f32.xlu0 %v165
    %v167 = vpop.xlane.xlu0 %166
    %v168 = vsel %vm121, %v160, 0.0
    %169 = vadd.xlane.f32.xlu0 %v168
    %v170 = vpop.xlane.xlu0 %169
    %v171 = vsel %vm121, %v161, 0.0
    %172 = vadd.xlane.f32.xlu0 %v171
    %v173 = vpop.xlane.xlu0 %172
    %v174 = vsel %vm121, %v162, 0.0
    %175 = vadd.xlane.f32.xlu0 %v174
    %v176 = vpop.xlane.xlu0 %175
    %v177 = vsel %vm121, %v163, 0.0
    %178 = vadd.xlane.f32.xlu0 %v177
    %v179 = vpop.xlane.xlu0 %178
    %v180 = vsel %vm121, %v164, 0.0
    %181 = vadd.xlane.f32.xlu0 %v180
    %v182 = vpop.xlane.xlu0 %181
    %v185 = vlaneseq
    %v186 = vand.u32 %v185, 127
    %v187 = vperm.slane %v155, %v186
    %v188 = vperm.slane %v158, %v186
    %vm189 = vcmask 1041409
    %v190 = vsel %vm189, %v188, %v187
    %v198 = vadd.s32 %v186, 4294967288
    %v199 = vperm.slane %v167, %v198
    %v200 = vadd.s32 %v186, 4294967280
    %v201 = vperm.slane %v170, %v200
    %vm202 = vcmask 195712
    %v203 = vsel %vm202, %v201, %v199
    %v204 = vadd.s32 %v186, 4294967272
    %v205 = vperm.slane %v173, %v204
    %vm206 = vcmask 261312
    %v207 = vsel %vm206, %v205, %v203
    %v208 = vperm.slane %v176, %v198
    %v209 = vperm.slane %v179, %v200
    %v210 = vsel %vm202, %v209, %v208
    %v211 = vperm.slane %v182, %v204
    %v212 = vsel %vm206, %v211, %v210
    %v213 = vsel %vm189, %v212, %v207
    %vm215 = vcmask 64512
    %v216 = vsel %vm215, %v190, %v213
    %217 = vrot.lane.b32.xlu0 %v111, 8
    %v218 = vpop.permute.xlu0 %217
    %219 = vrot.lane.b32.xlu0 %v111, 16
    %v220 = vpop.permute.xlu0 %219
    %221 = vrot.lane.b32.xlu0 %v111, 24
    %v222 = vpop.permute.xlu0 %221
    %v223 = vsel %vm215, %v111, %v218
    %vm224 = vcmask 130048
    %v225 = vsel %vm224, %v223, %v220
    %vm226 = vcmask 195584
    %v227 = vsel %vm226, %v225, %v222
    %vm228 = vcmp.gt.s32.totalorder %v227, 0
    %v229 = vsel %vm228, -inf, %v216
    %vm230 = vcmask 254976
    %v231 = vsel %vm230, %v229, -inf
    %232 = vmax.xlane.f32.xlu0 %v231
    %v233 = vpop.xlane.xlu0 %232
    %v234 = vmax.f32 %v233, -1e+30
    %v235 = vsub.f32 %v229, %v234
    %v236 = vmul.f32 %v235, 1.442695
    %v237 = vpow.pop %v236
    %v238 = vsel %vm230, %v237, 0.0
    %239 = vadd.xlane.f32.xlu0 %v238
    %v240 = vpop.xlane.xlu0 %239
    %v241 = vmax.f32 %v240, 1e-30
    %v242 = vrcp.pop %v241
    %v243 = vmul.f32 %v241, %v242
    %v244 = vsub.f32 1.0, %v243
    %v245 = vmul.f32 %v242, %v244
    %v246 = vadd.f32 %v242, %v245
    %vm247 = vweird.f32 %v241
    %vm248 = vweird.f32 %v242
    %vm249 = vmor %vm247, %vm248
    %v250 = vsel %vm249, %v242, %v246
    %v251 = vand.u32 2147483647, %v241
    %vm252 = vcmp.eq.f32.partialorder %v251, 8.507059e+37
    %v253 = vand.u32 %v241, 2147483648
    %v254 = vor.u32 1.1754944e-38, %v253
    %v255 = vsel %vm252, %v254, %v250
    %v256 = vmul.f32 1.0, %v255
    %v257 = vmul.f32 %v237, %v256
    %258 = vst.msk [vmem:[#allocation12] sm:$0x3] %vm230, %v257
    %v260 = vsel %vm121, %v103, 0
    %v263 = vsel %vm121, %v104, 0
    %265 = vmatpush.msra.mxu0 0.0
    %266 = vmatpush.msra.mxu0 0.0
    %267 = vmatpush.msra.mxu0 0.0
    %268 = vmatpush.msra.mxu0 0.0
    %269 = vmatpush.msra.mxu0 0.0
    %270 = vmatpush.msra.mxu0 0.0
    %271 = vmatpush.msra.mxu0 0.0
    %272 = vmatpush.msra.mxu0 0.0
    %273 = vmatpush.msra.mxu0 0.0
    %274 = vmatpush.msra.mxu0 0.0
    %275 = vmatpush.msra.mxu0 0.0
    %276 = vmatpush.msra.mxu0 0.0
    %277 = vmatpush.msra.mxu0 %v119
    %278 = vmatpush.msra.mxu0 %v118
    %279 = vmatpush.msra.mxu0 %v117
    %280 = vmatpush.msra.mxu0 %v116
    %281 = vmatmul.f32.gmra.mxu0 %v260
    %v282 = vpop.f32.mrf.mxu0
    %v283 = vadd.f32 0.0, %v282
    %284 = vmatmul.f32.gmra.mxu0 %v263
    %v285 = vpop.f32.mrf.mxu0
    %v286 = vadd.f32 0.0, %v285
    %287 = vdwg.mxu0
    %v289 = vsel %vm121, %v105, 0
    %v292 = vsel %vm121, %v106, 0
    %v295 = vsel %vm121, %v107, 0
    %v298 = vsel %vm121, %v108, 0
    %v301 = vsel %vm121, %v109, 0
    %v304 = vsel %vm121, %v110, 0
    %306 = vmatpush.msra.mxu0 0.0
    %307 = vmatpush.msra.mxu0 0.0
    %308 = vmatpush.msra.mxu0 0.0
    %309 = vmatpush.msra.mxu0 0.0
    %310 = vmatpush.msra.mxu0 0.0
    %311 = vmatpush.msra.mxu0 0.0
    %312 = vmatpush.msra.mxu0 0.0
    %313 = vmatpush.msra.mxu0 0.0
    %314 = vmatpush.msra.mxu0 0.0
    %315 = vmatpush.msra.mxu0 0.0
    %316 = vmatpush.msra.mxu0 0.0
    %317 = vmatpush.msra.mxu0 0.0
    %318 = vmatpush.msra.mxu0 %v119
    %319 = vmatpush.msra.mxu0 %v118
    %320 = vmatpush.msra.mxu0 %v117
    %321 = vmatpush.msra.mxu0 %v116
    %322 = vmatmul.f32.gmra.mxu0 %v289
    %v323 = vpop.f32.mrf.mxu0
    %v324 = vadd.f32 0.0, %v323
    %325 = vmatmul.f32.gmra.mxu0 %v292
    %v326 = vpop.f32.mrf.mxu0
    %v327 = vadd.f32 0.0, %v326
    %328 = vmatmul.f32.gmra.mxu0 %v295
    %v329 = vpop.f32.mrf.mxu0
    %v330 = vadd.f32 0.0, %v329
    %331 = vmatmul.f32.gmra.mxu0 %v298
    %v332 = vpop.f32.mrf.mxu0
    %v333 = vadd.f32 0.0, %v332
    %334 = vmatmul.f32.gmra.mxu0 %v301
    %v335 = vpop.f32.mrf.mxu0
    %v336 = vadd.f32 0.0, %v335
    %337 = vmatmul.f32.gmra.mxu0 %v304
    %v338 = vpop.f32.mrf.mxu0
    %v339 = vadd.f32 0.0, %v338
    %340 = vdwg.mxu0
    %v341 = vperm.slane %v257, 0
    %v342 = vlaneseq
    %v343 = vshrl.u32 %v342, 7
    %345 = vset.pattern.permute.xlu0 %v343
    %346 = vperm.xlu0 %345, %v341
    %v347 = vpop.permute.xlu0 %346
    %v348 = vperm.slane %v257, 1
    %v349 = vlaneseq
    %v350 = vshrl.u32 %v349, 7
    %352 = vset.pattern.permute.xlu0 %v350
    %353 = vperm.xlu0 %352, %v348
    %v354 = vpop.permute.xlu0 %353
    %v355 = vmul.f32 %v283, %v347
    %v356 = vmul.f32 %v286, %v354
    %v357 = vsel %vm121, %v355, 0.0
    %v358 = vrot.slane %v357, 4
    %v359 = vadd.f32 %v357, %v358
    %v360 = vrot.slane %v359, 2
    %v361 = vadd.f32 %v359, %v360
    %v362 = vrot.slane %v361, 1
    %v363 = vadd.f32 %v361, %v362
    %v364 = vsel %vm121, %v356, 0.0
    %v365 = vrot.slane %v364, 4
    %v366 = vadd.f32 %v364, %v365
    %v367 = vrot.slane %v366, 2
    %v368 = vadd.f32 %v366, %v367
    %v369 = vrot.slane %v368, 1
    %v370 = vadd.f32 %v368, %v369
    %v371 = vlaneseq
    %v372 = vshrl.u32 %v371, 7
    %v373 = vadd.s32 %v372, 8
    %374 = vset.pattern.permute.xlu0 %v373
    %375 = vperm.xlu0 %374, %v341
    %v376 = vpop.permute.xlu0 %375
    %v377 = vlaneseq
    %v378 = vshrl.u32 %v377, 7
    %v379 = vadd.s32 %v378, 16
    %380 = vset.pattern.permute.xlu0 %v379
    %381 = vperm.xlu0 %380, %v341
    %v382 = vpop.permute.xlu0 %381
    %v383 = vlaneseq
    %v384 = vshrl.u32 %v383, 7
    %v385 = vadd.s32 %v384, 24
    %386 = vset.pattern.permute.xlu0 %v385
    %387 = vperm.xlu0 %386, %v341
    %v388 = vpop.permute.xlu0 %387
    %v389 = vlaneseq
    %v390 = vshrl.u32 %v389, 7
    %v391 = vadd.s32 %v390, 8
    %392 = vset.pattern.permute.xlu0 %v391
    %393 = vperm.xlu0 %392, %v348
    %v394 = vpop.permute.xlu0 %393
    %v395 = vlaneseq
    %v396 = vshrl.u32 %v395, 7
    %v397 = vadd.s32 %v396, 16
    %398 = vset.pattern.permute.xlu0 %v397
    %399 = vperm.xlu0 %398, %v348
    %v400 = vpop.permute.xlu0 %399
    %v401 = vlaneseq
    %v402 = vshrl.u32 %v401, 7
    %v403 = vadd.s32 %v402, 24
    %404 = vset.pattern.permute.xlu0 %v403
    %405 = vperm.xlu0 %404, %v348
    %v406 = vpop.permute.xlu0 %405
    %v407 = vmul.f32 %v324, %v376
    %v408 = vmul.f32 %v327, %v382
    %v409 = vmul.f32 %v330, %v388
    %v410 = vmul.f32 %v333, %v394
    %v411 = vmul.f32 %v336, %v400
    %v412 = vmul.f32 %v339, %v406
    %v413 = vsel %vm121, %v407, 0.0
    %v414 = vsel %vm121, %v408, 0.0
    %v415 = vadd.f32 %v413, %v414
    %v416 = vsel %vm121, %v409, 0.0
    %v417 = vadd.f32 %v415, %v416
    %v418 = vrot.slane %v417, 4
    %v419 = vadd.f32 %v417, %v418
    %v420 = vrot.slane %v419, 2
    %v421 = vadd.f32 %v419, %v420
    %v422 = vrot.slane %v421, 1
    %v423 = vadd.f32 %v421, %v422
    %v424 = vsel %vm121, %v410, 0.0
    %v425 = vsel %vm121, %v411, 0.0
    %v426 = vadd.f32 %v424, %v425
    %v427 = vsel %vm121, %v412, 0.0
    %v428 = vadd.f32 %v426, %v427
    %v429 = vrot.slane %v428, 4
    %v430 = vadd.f32 %v428, %v429
    %v431 = vrot.slane %v430, 2
    %v432 = vadd.f32 %v430, %v431
    %v433 = vrot.slane %v432, 1
    %v434 = vadd.f32 %v432, %v433
    %v435 = vadd.f32 %v363, %v423
    %v436 = vadd.f32 %v370, %v434
    %v439 = vsel %vm189, %v436, %v435
    %441 = vst.msk [vmem:[#allocation11] sm:$0x3] %vm230, %v439
    // Predicated region
    $region46: #{tpu_custom_call.1} parent=1 // pred_check
      _
    $region47: #{tpu_custom_call.1} parent=1 // pred_check_branch
      %443 = sbr.rel (0) target = $region49
    $region48: #{tpu_custom_call.1} parent=1 // pred_region
      %445 = vsyncadd [#allocation4], 0
      %s447 = sshll.u32 [#allocation11], 4
      %s448 = int_to_ptr.vmem [resolvable:$true] %s447
      %s449 = sshll.u32 %s6, 4
      %s450 = int_to_ptr.hbm [resolvable:$true] %s449
      %452 = dma.vmem_to_hbm [thread:$0]  %s448, 32, %s450, [#allocation4]
    $region49: #{tpu_custom_call.1} parent=1 // pred_fallthru
      _
    // Predicated region
    $region50: #{tpu_custom_call.1} parent=1 // pred_check
      _
    $region51: #{tpu_custom_call.1} parent=1 // pred_check_branch
      %454 = sbr.rel (0) target = $region53
    $region52: #{tpu_custom_call.1} parent=1 // pred_region
      %456 = vsyncadd [#allocation13], 0
      %s458 = sshll.u32 [#allocation12], 4
      %s459 = int_to_ptr.vmem [resolvable:$true] %s458
      %s460 = sshll.u32 %s7, 4
      %s461 = int_to_ptr.hbm [resolvable:$true] %s460
      %463 = dma.vmem_to_hbm [thread:$0]  %s459, 32, %s461, [#allocation13]
    $region53: #{tpu_custom_call.1} parent=1 // pred_fallthru
      _
    // Predicated region
    $region54: #{tpu_custom_call.1} parent=1 // pred_check
      _
    $region55: #{tpu_custom_call.1} parent=1 // pred_check_branch
      %465 = sbr.rel (0) target = $region57
    $region56: #{tpu_custom_call.1} parent=1 // pred_region
      %467 = dma.done [#allocation4], 32
    $region57: #{tpu_custom_call.1} parent=1 // pred_fallthru
      _
    // Predicated region
    $region58: #{tpu_custom_call.1} parent=1 // pred_check
      _
    $region59: #{tpu_custom_call.1} parent=1 // pred_check_branch
      %469 = sbr.rel (0) target = $region61
    $region60: #{tpu_custom_call.1} parent=1 // pred_region
      %471 = dma.done [#allocation13], 32
    $region61: #{tpu_custom_call.1} parent=1 // pred_fallthru
      _
    %472 = vsyncpa [#allocation3], 1
    %473 = vsyncpa [#allocation6], 1
    %474 = vsyncpa [#allocation9], 1
    %475 = vsyncpa [#allocation4], 1
    %476 = vsyncpa [#allocation13], 1

</llo_original>
